<compile_context>
chip_gen: v7x
topology: tpu7x:2x2x1
jax: 0.10.0
libtpu: 0.0.40
codegen_flags: <defaults>
</compile_context>

<pallas_src>
import functools

import jax
import jax.numpy as jnp
from jax.experimental import pallas as pl
from jax.experimental.pallas import tpu as pltpu


_HIGHEST = jax.lax.Precision.HIGHEST


# ---------------------------------------------------------------------------
# Kernel
# ---------------------------------------------------------------------------
def _layernorm_kernel(x_ref, g_ref, b_ref, o_ref, *, feat, feat_padded, eps,
                      use_mxu_reduce):
    """LayerNorm over the last axis of a (row_tile, feat_padded) block."""
    x = x_ref[...].astype(jnp.float32)          # (rt, fp)
    gamma = g_ref[...]                          # (1, fp), already float32
    beta = b_ref[...]

    inv_n = jnp.float32(1.0 / feat)
    # Guard feat == 1 (Bessel's correction divides by zero; PyTorch gives NaN
    # there -- intentional divergence: we return beta instead).
    inv_nm1 = jnp.float32(1.0 / max(feat - 1, 1))

    def _mask(d):
        if feat_padded == feat:
            return d
        lane = jax.lax.broadcasted_iota(jnp.int32, d.shape, 1)
        return jnp.where(lane < feat, d, jnp.float32(0.0))

    if use_mxu_reduce:
        # Cross-lane reductions on the (otherwise idle) MXU: multiplying by an
        # all-ones (fp, fp) matrix returns each row sum already broadcast
        # across every lane, so the mean / inv broadcasts disappear as well.
        # HIGHEST precision keeps the f32 sums accurate (multi-pass MXU).
        ones = jnp.ones((feat_padded, feat_padded), dtype=jnp.float32)
        mean = jnp.dot(x, ones, precision=_HIGHEST) * inv_n          # (rt, fp)
        diff = _mask(x - mean)
        var = jnp.dot(diff * diff, ones, precision=_HIGHEST) * inv_nm1
    else:
        # XLU cross-lane reductions (fine on v5e and for feat > 128, where the
        # kernel is firmly HBM/store bound).  Padded lanes of x are zero so the
        # first sum is already correct; diff must be masked before squaring.
        mean = jnp.sum(x, axis=-1, keepdims=True) * inv_n            # (rt, 1)
        diff = _mask(x - mean)
        var = jnp.sum(diff * diff, axis=-1, keepdims=True) * inv_nm1

    std = jnp.sqrt(var)
    # Full-precision reciprocal (lowers to a real divide, NOT the approximate
    # EUP vrcp).  It is off the critical path of this memory-bound kernel and
    # preserves the torch-faithful tolerance.
    inv = pl.reciprocal(std + jnp.float32(eps), approx=False)

    o_ref[...] = ((diff * inv) * gamma + beta).astype(o_ref.dtype)


# ---------------------------------------------------------------------------
# Tiling / VMEM heuristics
# ---------------------------------------------------------------------------
def _vmem_capacity_bytes():
    """Physical VMEM per core; conservative (v7x-sized) fallback."""
    try:
        info = pltpu.get_tpu_info()
        cap = getattr(info, "vmem_capacity_bytes", None)
        if cap:
            return int(cap)
    except Exception:
        pass
    return 64 * 1024 * 1024


def _device_kind():
    try:
        return jax.devices()[0].device_kind.lower()
    except Exception:
        return ""


def _sublane_multiple(itemsize):
    # f32 -> 8 rows per sublane group, bf16 -> 16, int8/fp8 -> 32.
    return {4: 8, 2: 16, 1: 32}.get(int(itemsize), 8)


def _choose_row_tile(rows, per_row_bytes, tile_budget_bytes, sub, want_grid_ge2):
    """Largest sublane-aligned row tile whose working set fits the budget."""
    t = tile_budget_bytes // max(per_row_bytes, 1)
    t = max(sub, (int(t) // sub) * sub)
    t = min(t, rows)                      # rows is already sublane-padded
    if want_grid_ge2 and rows > sub:
        # Dual-TensorCore chips (v7x / v4 / v5p): keep >= 2 grid steps so both
        # cores get work under dimension_semantics=("parallel",).
        half = (((rows + 1) // 2 + sub - 1) // sub) * sub
        t = min(t, half)
    return max(sub, t)


# ---------------------------------------------------------------------------
# Wrapper
# ---------------------------------------------------------------------------
def pallas_layernorm(x2d, gamma, beta, *, eps=1e-6, row_tile=None,
                     donate_input=False):
    """x2d: (rows, feat). LayerNorm over last axis with PyTorch semantics."""
    orig_rows, feat = x2d.shape
    itemsize = jnp.dtype(x2d.dtype).itemsize
    sub = _sublane_multiple(itemsize)

    # Lane-dense features: pad to a multiple of 128 so stores are full-width
    # (unmasked vst); padded lanes are masked inside the kernel.
    feat_padded = ((feat + 127) // 128) * 128
    if feat_padded != feat:
        x2d = jnp.pad(x2d, ((0, 0), (0, feat_padded - feat)))

    # Sublane-align the row count for the packed dtype.
    pad_rows = (-orig_rows) % sub
    if pad_rows:
        x2d = jnp.pad(x2d, ((0, pad_rows), (0, 0)))
    rows = orig_rows + pad_rows

    kind = _device_kind()
    newer_gen = ("v6" in kind) or ("v7" in kind)
    dual_core = ("v7" in kind) or ("v4" in kind) or ("v5p" in kind)
    # MXU reductions only where the XLU would otherwise be the binding slot
    # (feat == 128 on high-HBM-bandwidth chips); v5e stays HBM/store bound.
    use_mxu_reduce = newer_gen and (feat_padded == 128)

    vmem_cap = _vmem_capacity_bytes()
    in_bytes = feat_padded * itemsize
    f32_bytes = feat_padded * 4
    # 2x double-buffered input + 2x double-buffered output + ~5 f32 in-kernel
    # temporaries (f32 copy of x, diff, squared/product temps, matmul results).
    per_row = 4 * in_bytes + 5 * f32_bytes
    tile_budget = max(min(vmem_cap // 2 - 8 * 2**20, 48 * 2**20), 8 * 2**20)

    if row_tile is None:
        row_tile = _choose_row_tile(rows, per_row, tile_budget, sub, dual_core)
    row_tile = max(sub, (int(row_tile) // sub) * sub)

    grid = pl.cdiv(rows, row_tile)

    # Scoped-VMEM limit derived from the tile actually chosen (plus slack),
    # kept below physical VMEM (64 MiB on v7x, 128 MiB on v5e/v6e).
    needed = per_row * row_tile + 4 * 2**20
    vmem_limit = int(min(vmem_cap - 8 * 2**20, max(needed, 32 * 2**20)))

    gamma2d = gamma.astype(jnp.float32).reshape(1, feat)
    beta2d = beta.astype(jnp.float32).reshape(1, feat)
    if feat_padded != feat:
        gamma2d = jnp.pad(gamma2d, ((0, 0), (0, feat_padded - feat)))
        beta2d = jnp.pad(beta2d, ((0, 0), (0, feat_padded - feat)))

    kernel = functools.partial(_layernorm_kernel, feat=feat,
                               feat_padded=feat_padded, eps=eps,
                               use_mxu_reduce=use_mxu_reduce)

    call = pl.pallas_call(
        kernel,
        out_shape=jax.ShapeDtypeStruct((rows, feat_padded), x2d.dtype),
        grid_spec=pltpu.PrefetchScalarGridSpec(
            num_scalar_prefetch=0,
            grid=(grid,),
            in_specs=[
                pl.BlockSpec((row_tile, feat_padded), lambda i: (i, 0)),
                pl.BlockSpec((1, feat_padded), lambda i: (0, 0)),
                pl.BlockSpec((1, feat_padded), lambda i: (0, 0)),
            ],
            out_specs=pl.BlockSpec((row_tile, feat_padded), lambda i: (i, 0)),
        ),
        compiler_params=pltpu.CompilerParams(
            dimension_semantics=("parallel",),
            vmem_limit_bytes=vmem_limit,
        ),
        # Optional in-place write when the caller no longer needs x.
        input_output_aliases=({0: 0} if donate_input else {}),
    )

    y = call(x2d, gamma2d, beta2d)
    if pad_rows or feat_padded != feat:
        y = y[:orig_rows, :feat]
    return y


def encoder_forward(x, mask, params, *, n_layers, eps=1e-6):
    """Encoder.forward: run x through N layers, then the final LayerNorm.

    x: (batch, seq, features); mask accepted for signature parity.
    """
    # TODO(synk): the abstract `layer(x, mask)` forward is not defined in the
    # provided source (only Encoder/LayerNorm/clones), so the N-layer stack is
    # an identity pass-through here.
    for _ in range(n_layers):
        x = x  # layer(x, mask) -- unspecified in the reference source

    b, s, f = x.shape
    x2d = x.reshape(b * s, f)
    y2d = pallas_layernorm(x2d, params["gamma"], params["beta"], eps=eps)
    return y2d.reshape(b, s, f)


def init_params(features):
    # Matches LayerNorm.__init__: gamma=ones, beta=zeros.
    return {
        "gamma": jnp.ones((features,), dtype=jnp.float32),
        "beta": jnp.zeros((features,), dtype=jnp.float32),
    }


def _reference_layernorm(x, gamma, beta, eps=1e-6):
    mean = jnp.mean(x, axis=-1, keepdims=True)
    # Unbiased std, matching torch.std default; eps added to std, not var.
    var = jnp.sum((x - mean) ** 2, axis=-1, keepdims=True) / (x.shape[-1] - 1)
    std = jnp.sqrt(var)
    return gamma * (x - mean) / (std + eps) + beta


if __name__ == "__main__":
    # features=128 keeps the output lane-dense and exercises the MXU-reduction
    # path on v6e/v7x.
    batch, seq, features = 2, 8, 128
    n_layers = 3

    key = jax.random.PRNGKey(0)
    kx, _ = jax.random.split(key)
    x = jax.random.normal(kx, (batch, seq, features), dtype=jnp.float32)
    mask = jnp.ones((batch, 1, seq), dtype=jnp.float32)  # unused by identity stack

    params = init_params(features)

    out = encoder_forward(x, mask, params, n_layers=n_layers)
    out = jax.block_until_ready(out)

    ref = _reference_layernorm(x, params["gamma"], params["beta"])
    assert out.shape == (batch, seq, features)
    assert jnp.allclose(out, ref, atol=2e-5, rtol=2e-5), "mismatch vs reference"

    print("KERNEL_OK")
</pallas_src>

<mosaic_0001>
module attributes {stable_mosaic.version = 11 : i64} {
  func.func @_layernorm_kernel(%arg0: i32, %arg1: memref<16x128xf32, #tpu.memory_space<vmem>>, %arg2: memref<1x128xf32, #tpu.memory_space<vmem>>, %arg3: memref<1x128xf32, #tpu.memory_space<vmem>>, %arg4: memref<16x128xf32, #tpu.memory_space<vmem>>) attributes {dimension_semantics = [#tpu.dimension_semantics<parallel>], iteration_bounds = array<i64: 1>, scalar_prefetch = 0 : i64, scratch_operands = 0 : i64, tpu.core_type = #tpu.core_type<tc>, window_params = [{transform_indices = @transform_0, window_bounds = array<i64: 16, 128>}, {pipeline_mode = #tpu.pipeline_mode<synchronous>, transform_indices = @transform_1, window_bounds = array<i64: 1, 128>}, {pipeline_mode = #tpu.pipeline_mode<synchronous>, transform_indices = @transform_2, window_bounds = array<i64: 1, 128>}, {transform_indices = @transform_3, window_bounds = array<i64: 16, 128>}]} {
    %c0 = arith.constant 0 : index
    %c0_0 = arith.constant 0 : index
    %0 = vector.load %arg1[%c0, %c0_0] : memref<16x128xf32, #tpu.memory_space<vmem>>, vector<16x128xf32>
    %c0_1 = arith.constant 0 : index
    %c0_2 = arith.constant 0 : index
    %1 = vector.load %arg2[%c0_1, %c0_2] : memref<1x128xf32, #tpu.memory_space<vmem>>, vector<1x128xf32>
    %c0_3 = arith.constant 0 : index
    %c0_4 = arith.constant 0 : index
    %2 = vector.load %arg3[%c0_3, %c0_4] : memref<1x128xf32, #tpu.memory_space<vmem>>, vector<1x128xf32>
    %cst = arith.constant dense<0.000000e+00> : vector<16xf32>
    %3 = vector.multi_reduction <add>, %0, %cst [1] : vector<16x128xf32> to vector<16xf32>
    %4 = vector.shape_cast %3 : vector<16xf32> to vector<16x1xf32>
    %cst_5 = arith.constant 7.812500e-03 : f32
    %5 = vector.broadcast %cst_5 : f32 to vector<16x1xf32>
    %6 = arith.mulf %4, %5 : vector<16x1xf32>
    %7 = vector.broadcast %6 : vector<16x1xf32> to vector<16x128xf32>
    %8 = arith.subf %0, %7 : vector<16x128xf32>
    %9 = arith.mulf %8, %8 : vector<16x128xf32>
    %cst_6 = arith.constant dense<0.000000e+00> : vector<16xf32>
    %10 = vector.multi_reduction <add>, %9, %cst_6 [1] : vector<16x128xf32> to vector<16xf32>
    %11 = vector.shape_cast %10 : vector<16xf32> to vector<16x1xf32>
    %cst_7 = arith.constant 0.00787401571 : f32
    %12 = vector.broadcast %cst_7 : f32 to vector<16x1xf32>
    %13 = arith.mulf %11, %12 : vector<16x1xf32>
    %14 = math.sqrt %13 : vector<16x1xf32>
    %cst_8 = arith.constant 9.99999997E-7 : f32
    %15 = vector.broadcast %cst_8 : f32 to vector<16x1xf32>
    %16 = arith.addf %14, %15 : vector<16x1xf32>
    %17 = tpu.reciprocal %16 : vector<16x1xf32> -> vector<16x1xf32>
    %18 = vector.broadcast %17 : vector<16x1xf32> to vector<16x128xf32>
    %19 = arith.mulf %8, %18 : vector<16x128xf32>
    %20 = vector.broadcast %1 : vector<1x128xf32> to vector<16x128xf32>
    %21 = arith.mulf %19, %20 : vector<16x128xf32>
    %22 = vector.broadcast %2 : vector<1x128xf32> to vector<16x128xf32>
    %23 = arith.addf %21, %22 : vector<16x128xf32>
    %c0_9 = arith.constant 0 : index
    %c0_10 = arith.constant 0 : index
    %24 = vector.load %arg4[%c0_9, %c0_10] : memref<16x128xf32, #tpu.memory_space<vmem>>, vector<16x128xf32>
    tpu.vector_store %arg4[%c0_9, %c0_10], %23 {strides = array<i32>} : memref<16x128xf32, #tpu.memory_space<vmem>>, vector<16x128xf32>,
    return
  }
  func.func @transform_0(%arg0: i32) -> (i32, i32) {
    %c0_i32 = arith.constant 0 : i32
    %c0_i32_0 = arith.constant 0 : i32
    return %arg0, %c0_i32 : i32, i32
  }
  func.func @transform_1(%arg0: i32) -> (i32, i32) {
    %c0_i32 = arith.constant 0 : i32
    %c0_i32_0 = arith.constant 0 : i32
    %c0_i32_1 = arith.constant 0 : i32
    return %c0_i32, %c0_i32_0 : i32, i32
  }
  func.func @transform_2(%arg0: i32) -> (i32, i32) {
    %c0_i32 = arith.constant 0 : i32
    %c0_i32_0 = arith.constant 0 : i32
    %c0_i32_1 = arith.constant 0 : i32
    return %c0_i32, %c0_i32_0 : i32, i32
  }
  func.func @transform_3(%arg0: i32) -> (i32, i32) {
    %c0_i32 = arith.constant 0 : i32
    %c0_i32_0 = arith.constant 0 : i32
    return %arg0, %c0_i32 : i32, i32
  }
}

</mosaic_0001>

<llo_original>
// kernel: tpu_custom_call.1
$region0: #{tpu_custom_call.1}
  #allocation0 [shape = 'u32[]', space=smem, size = 0x4, offset = 0x4, fixed_abs, tag = 'smem constant byte address 0x4 - core index']
  #allocation1 [shape = 'u32[144,128]{1,0:T(1,128)}', space=vmem, size = 0x12000, scoped, tag = 'internal scratch']
  %s0 = inlined_call_operand.hbm [shape: f32[16,128], index: 0, kind: input, shape index: {}]
  %s1 = inlined_call_operand.vmem [shape: f32[1,128], index: 1, kind: input, shape index: {}]
  %s2 = inlined_call_operand.vmem [shape: f32[1,128], index: 2, kind: input, shape index: {}]
  %s3 = inlined_call_operand.hbm [shape: f32[16,128], index: 3, kind: output, shape index: {}]
  %s4 = sld [smem:[#allocation0]]
  $region26: #{tpu_custom_call.1} parent=0
    _
  %s6 = ssub.s32 1, %s4
  %s7 = scalar_select 0, %s6, %s4
  $region1: #{tpu_custom_call.1} parent=0
    #allocation2 [shape = 'u8[8192]{0}', space=vmem, size = 0x2000, scoped, tag = 'input window, operand 0, single buffered']
    #allocation3 [shape = 's32[1]{0}', space=sflag, size = 0x4, scoped, tag = 'scoped memory for tpu_custom_call.1']
    #allocation4 [shape = 's32[1]{0}', space=sflag, size = 0x4, scoped, tag = 'scoped memory for tpu_custom_call.1']
    #allocation5 [shape = 'u8[8192]{0}', space=vmem, size = 0x2000, scoped, tag = 'output window, operand 0, single buffered']
    %8 = vsyncpa [#allocation3], 0
    %9 = vsyncpa [#allocation4], 0
    // Predicated region
    $region2: #{tpu_custom_call.1} parent=1 // pred_check
      _
    $region3: #{tpu_custom_call.1} parent=1 // pred_check_branch
      %11 = sbr.rel (0) target = $region5
    $region4: #{tpu_custom_call.1} parent=1 // pred_region
      %s13 = ssub.s32 256, 256
      %14 = vsyncadd [#allocation3], %s13
      %s15 = sshll.u32 [#allocation2], 4
      %s16 = int_to_ptr.vmem [resolvable:$true] %s15
      %21 = dma.hbm_to_vmem [thread:$0]  %s0, 256, %s16, [#allocation3], 128, 128, 8
    $region5: #{tpu_custom_call.1} parent=1 // pred_fallthru
      _
    // Predicated region
    $region6: #{tpu_custom_call.1} parent=1 // pred_check
      _
    $region7: #{tpu_custom_call.1} parent=1 // pred_check_branch
      %23 = sbr.rel (0) target = $region9
    $region8: #{tpu_custom_call.1} parent=1 // pred_region
      _
    $region9: #{tpu_custom_call.1} parent=1 // pred_fallthru
      _
    // Predicated region
    $region10: #{tpu_custom_call.1} parent=1 // pred_check
      _
    $region11: #{tpu_custom_call.1} parent=1 // pred_check_branch
      %25 = sbr.rel (0) target = $region13
    $region12: #{tpu_custom_call.1} parent=1 // pred_region
      _
    $region13: #{tpu_custom_call.1} parent=1 // pred_fallthru
      _
    // Predicated region
    $region14: #{tpu_custom_call.1} parent=1 // pred_check
      _
    $region15: #{tpu_custom_call.1} parent=1 // pred_check_branch
      %27 = sbr.rel (0) target = $region17
    $region16: #{tpu_custom_call.1} parent=1 // pred_region
      %28 = dma.done [#allocation3], 256
    $region17: #{tpu_custom_call.1} parent=1 // pred_fallthru
      _
    %v29 = vld [vmem:[#allocation2] sm:$0xff]
    %v30 = vld [vmem:[#allocation2 + $0x8] sm:$0xff]
    %v31 = vld [vmem:[%s1] sm:$0x1]
    %v32 = vld [vmem:[%s2] sm:$0x1]
    %33 = vadd.xlane.f32.xlu0 %v29
    %v34 = vpop.xlane.xlu0 %33
    %35 = vadd.xlane.f32.xlu0 %v30
    %v36 = vpop.xlane.xlu0 %35
    %v37 = vmul.f32 %v34, 0.0078125
    %v38 = vmul.f32 %v36, 0.0078125
    %v39 = vsub.f32 %v29, %v37
    %v40 = vsub.f32 %v30, %v38
    %v41 = vmul.f32 %v39, %v39
    %v42 = vmul.f32 %v40, %v40
    %43 = vadd.xlane.f32.xlu0 %v41
    %v44 = vpop.xlane.xlu0 %43
    %45 = vadd.xlane.f32.xlu0 %v42
    %v46 = vpop.xlane.xlu0 %45
    %v47 = vmul.f32 %v44, 0.007874016
    %v48 = vmul.f32 %v46, 0.007874016
    %v49 = vrsqrt.pop %v47
    %v50 = vmul.f32 %v47, %v49
    %vm51 = vcmp.eq.f32.partialorder %v47, inf
    %v52 = vsel %vm51, %v47, %v50
    %vm53 = vcmp.eq.f32.partialorder %v47, 0.0
    %v54 = vand.u32 %v47, 2147483648
    %v55 = vsel %vm53, %v54, %v52
    %v56 = vrsqrt.pop %v48
    %v57 = vmul.f32 %v48, %v56
    %vm58 = vcmp.eq.f32.partialorder %v48, inf
    %v59 = vsel %vm58, %v48, %v57
    %vm60 = vcmp.eq.f32.partialorder %v48, 0.0
    %v61 = vand.u32 %v48, 2147483648
    %v62 = vsel %vm60, %v61, %v59
    %v63 = vadd.f32 %v55, 1e-06
    %v64 = vadd.f32 %v62, 1e-06
    %v65 = vrcp.pop %v63
    %v66 = vrcp.pop %v64
    %v67 = vmul.f32 %v39, %v65
    %v68 = vmul.f32 %v40, %v66
    %v70 = vlaneseq
    %v71 = vshrl.u32 %v70, 7
    %v72 = vsub.s32 0, %v71
    %v73 = vrot.slane %v31, %v72
    %v75 = vmul.f32 %v67, %v73
    %v76 = vmul.f32 %v68, %v73
    %v78 = vlaneseq
    %v79 = vshrl.u32 %v78, 7
    %v80 = vsub.s32 0, %v79
    %v81 = vrot.slane %v32, %v80
    %v83 = vadd.f32 %v75, %v81
    %v84 = vadd.f32 %v76, %v81
    %85 = vst [vmem:[#allocation5] sm:$0xff] %v83
    %86 = vst [vmem:[#allocation5 + $0x8] sm:$0xff] %v84
    // Predicated region
    $region18: #{tpu_custom_call.1} parent=1 // pred_check
      _
    $region19: #{tpu_custom_call.1} parent=1 // pred_check_branch
      %88 = sbr.rel (0) target = $region21
    $region20: #{tpu_custom_call.1} parent=1 // pred_region
      %s90 = ssub.s32 256, 256
      %91 = vsyncadd [#allocation4], %s90
      %s92 = sshll.u32 [#allocation5], 4
      %s93 = int_to_ptr.vmem [resolvable:$true] %s92
      %98 = dma.vmem_to_hbm [thread:$0]  %s93, 256, %s3, [#allocation4], 128, 128, 8
    $region21: #{tpu_custom_call.1} parent=1 // pred_fallthru
      _
    // Predicated region
    $region22: #{tpu_custom_call.1} parent=1 // pred_check
      _
    $region23: #{tpu_custom_call.1} parent=1 // pred_check_branch
      %100 = sbr.rel (0) target = $region25
    $region24: #{tpu_custom_call.1} parent=1 // pred_region
      %101 = dma.done [#allocation4], 256
    $region25: #{tpu_custom_call.1} parent=1 // pred_fallthru
      _
    %102 = vsyncpa [#allocation3], 1
    %103 = vsyncpa [#allocation4], 1

</llo_original>
